<compile_context>
chip_gen: v6e
topology: v6e:2x2x1
jax: 0.10.0
libtpu: 0.0.40
codegen_flags: <defaults>
</compile_context>

<pallas_src>
import jax
import jax.numpy as jnp
from jax.experimental import pallas as pl
from jax.experimental.pallas import tpu as pltpu


def _plan_chunks(shape, itemsize, *, max_chunks=4, min_chunk_bytes=1 << 20):
    """Split the leading axis into up to `max_chunks` contiguous chunks.

    Returns a list of (start, length) pairs; [(None, None)] means a single
    whole-array DMA (scalars, tiny arrays, or leading dim of 1).
    """
    if len(shape) == 0 or shape[0] <= 1:
        return [(None, None)]
    lead = shape[0]
    total_bytes = itemsize
    for d in shape:
        total_bytes *= d
    n = int(min(max_chunks, lead, max(1, total_bytes // min_chunk_bytes)))
    if n <= 1:
        return [(None, None)]
    base, rem = divmod(lead, n)
    bounds, start = [], 0
    for i in range(n):
        c = base + (1 if i < rem else 0)
        bounds.append((start, c))
        start += c
    return bounds


def _make_copy_kernel(chunk_bounds):
    n_chunks = len(chunk_bounds)

    def kernel(x_hbm, o_hbm, sem):
        def desc(i):
            s, c = chunk_bounds[i]
            if s is None:  # whole-array copy
                return pltpu.make_async_copy(x_hbm, o_hbm, sem.at[i])
            return pltpu.make_async_copy(
                x_hbm.at[pl.ds(s, c)], o_hbm.at[pl.ds(s, c)], sem.at[i])

        # Issue every chunk's DMA first (multiple outstanding descriptors keep
        # the HBM read/write pipes full), then wait on all of them.
        for i in range(n_chunks):
            desc(i).start()
        for i in range(n_chunks):
            desc(i).wait()

    return kernel, n_chunks


def identity(x: jax.Array, *, copy: bool = False) -> jax.Array:
    """Pallas identity: out = x (same shape, same dtype, bit-exact).

    Default path is a true no-op (returns the input array).  Pass `copy=True`
    to force a fresh output buffer produced by a Pallas kernel that streams
    the bytes HBM->HBM with the DMA engine (no VMEM staging, no grid).
    """
    if not copy:
        return x
    if x.size == 0:
        return x

    itemsize = jnp.dtype(x.dtype).itemsize
    chunk_bounds = _plan_chunks(x.shape, itemsize)
    kernel, n_chunks = _make_copy_kernel(chunk_bounds)

    return pl.pallas_call(
        kernel,
        out_shape=jax.ShapeDtypeStruct(x.shape, x.dtype),
        in_specs=[pl.BlockSpec(memory_space=pl.ANY)],
        out_specs=pl.BlockSpec(memory_space=pl.ANY),
        scratch_shapes=[pltpu.SemaphoreType.DMA((n_chunks,))],
        cost_estimate=pl.CostEstimate(
            flops=0,
            transcendentals=0,
            bytes_accessed=2 * x.size * itemsize),
    )(x)


if __name__ == "__main__":
    key = jax.random.PRNGKey(0)
    x = jax.random.normal(key, (2, 4, 16, 16), dtype=jnp.float32)

    # Default path: identity is a no-op, returns the input untouched.
    y = identity(x)
    jax.block_until_ready(y)
    assert y.shape == x.shape and y.dtype == x.dtype
    assert bool(jnp.array_equal(y, x))

    # Explicit-copy path: exercises the Pallas HBM->HBM single-DMA kernel.
    y_copy = identity(x, copy=True)
    jax.block_until_ready(y_copy)
    assert y_copy.shape == x.shape and y_copy.dtype == x.dtype
    assert bool(jnp.array_equal(y_copy, x))

    # Larger input: exercises the multi-chunk (outstanding DMAs) path.
    x_big = jax.random.normal(key, (8, 512, 256), dtype=jnp.float32)
    y_big = identity(x_big, copy=True)
    jax.block_until_ready(y_big)
    assert y_big.shape == x_big.shape and y_big.dtype == x_big.dtype
    assert bool(jnp.array_equal(y_big, x_big))

    print("KERNEL_OK")
</pallas_src>

<mosaic_0001>
module attributes {stable_mosaic.version = 11 : i64} {
  func.func @kernel(%arg0: memref<2x4x16x16xf32, #tpu.memory_space<any>>, %arg1: memref<2x4x16x16xf32, #tpu.memory_space<any>>, %arg2: memref<1x!tpu.dma_semaphore, #tpu.memory_space<semaphore_mem>>) attributes {dimension_semantics = [], scalar_prefetch = 0 : i64, scratch_operands = 1 : i64, tpu.core_type = #tpu.core_type<tc>} {
    %c0_i32 = arith.constant 0 : i32
    %0 = tpu.memref_slice %arg2[%c0_i32] : memref<1x!tpu.dma_semaphore, #tpu.memory_space<semaphore_mem>> -> memref<1x!tpu.dma_semaphore, #tpu.memory_space<semaphore_mem>>
    %1 = tpu.memref_squeeze %0 : memref<1x!tpu.dma_semaphore, #tpu.memory_space<semaphore_mem>> -> memref<!tpu.dma_semaphore, #tpu.memory_space<semaphore_mem>>
    tpu.enqueue_dma source(%arg0 : memref<2x4x16x16xf32, #tpu.memory_space<any>>) target(%arg1 : memref<2x4x16x16xf32, #tpu.memory_space<any>>) target_semaphore(%1 : memref<!tpu.dma_semaphore, #tpu.memory_space<semaphore_mem>>)
    %c0_i32_0 = arith.constant 0 : i32
    %2 = tpu.memref_slice %arg2[%c0_i32_0] : memref<1x!tpu.dma_semaphore, #tpu.memory_space<semaphore_mem>> -> memref<1x!tpu.dma_semaphore, #tpu.memory_space<semaphore_mem>>
    %3 = tpu.memref_squeeze %2 : memref<1x!tpu.dma_semaphore, #tpu.memory_space<semaphore_mem>> -> memref<!tpu.dma_semaphore, #tpu.memory_space<semaphore_mem>>
    tpu.wait_dma2 semaphore(%3 : memref<!tpu.dma_semaphore, #tpu.memory_space<semaphore_mem>>) src(%arg0 : memref<2x4x16x16xf32, #tpu.memory_space<any>>) dst(%arg1 : memref<2x4x16x16xf32, #tpu.memory_space<any>>)
    return
  }
}

</mosaic_0001>

<llo_original>
// kernel: tpu_custom_call.1
$region0: #{tpu_custom_call.1}
  #allocation0 [shape = 'u32[]', space=smem, size = 0x4, offset = 0x4, fixed_abs, tag = 'smem constant byte address 0x4 - core index']
  #allocation1 [shape = 'u32[144,128]{1,0:T(1,128)}', space=vmem, size = 0x12000, scoped, tag = 'internal scratch']
  #allocation2 [shape = 's32[1]{0}', space=sflag, size = 0x4, scoped, tag = 'scratch operand']
  #allocation3 [shape = 's32[]', space=sflag, size = 0x4, offset = 0, fixed_abs, tag = 'sflag constant byte address 0x0 - dummy sync flag']
  #allocation4 [shape = 'u32[0]{0}', space=smem, size = 0, offset = 0, fixed_abs, tag = 'smem constant byte address 0x0 - null']
  %s0 = inlined_call_operand.hbm [shape: f32[2,4,16,16], index: 0, kind: input, shape index: {}]
  %s1 = inlined_call_operand.hbm [shape: f32[2,4,16,16], index: 1, kind: output, shape index: {}]
  %s2 = sld [smem:[#allocation0]]
  $region2: #{tpu_custom_call.1} parent=0
    _
  %s4 = ssub.s32 1, %s2
  %s5 = scalar_select 0, %s4, %s2
  %s7 = sshll.u32 1, 14
  %s8 = sxor.u32 4294967295, %s7
  %12 = dma.general %s0, 2048, %s1, [#allocation2], 131072, [#allocation4], 0, 0
  %s13 = smul.u32 2, 4
  %s14 = smul.u32 %s13, 16
  %s15 = smul.u32 %s14, 1
  %s16 = sshll.u32 %s15, 4
  %17 = dma.done [#allocation2], %s16
  %18 = vsyncmov [#allocation2]
  %s19 = vpop.sfrf %18
  %p20 = scmp.eq.s32.totalorder %s19, 0
  %p21 = pneg %p20
  %23 = shalt.err (%p21)

</llo_original>
